<compile_context>
chip_gen: v6e
topology: v6e:2x2x1
jax: 0.10.0
libtpu: 0.0.40
codegen_flags: <defaults>
</compile_context>

<pallas_src>
import functools

import jax
import jax.numpy as jnp
from jax.experimental import pallas as pl
from jax.experimental.pallas import tpu as pltpu


# ---------------------------------------------------------------------------
# VMEM-aware tile sizing (v7x: 64 MiB / TC, v5e & v6e: 128 MiB)
# ---------------------------------------------------------------------------
def _vmem_capacity_bytes():
    try:
        return int(pltpu.get_tpu_info().vmem_capacity_bytes)
    except Exception:
        return 64 * 1024 * 1024  # conservative (v7x-sized) fallback


_VMEM_CAP = _vmem_capacity_bytes()
# Target for the double-buffered working set (inputs+outputs+f32 temporaries).
_VMEM_BUDGET = int(_VMEM_CAP * 0.35)
# Scoped VMEM limit handed to Mosaic (>= default 32 MiB, leaves headroom).
_VMEM_LIMIT = min(max(int(_VMEM_CAP * 0.5), 32 * 1024 * 1024), 96 * 1024 * 1024)


def _round_up(x, m):
    return ((x + m - 1) // m) * m


def _round_down8(x):
    return max(8, (x // 8) * 8)


def _pick_row_tile(n_rows, bytes_per_row, max_tile=8192):
    """Largest row tile whose pipelined working set fits the VMEM budget."""
    fit = max(8, _VMEM_BUDGET // max(1, bytes_per_row))
    tile = min(n_rows, fit, max_tile)
    if tile < n_rows:
        tile = _round_down8(tile)  # (8,128) tiling: sublane dim multiple of 8
    return tile


def _compiler_params():
    # Row axis is embarrassingly parallel -> shard across both v7x TCs;
    # harmless on single-TC v5e/v6e.
    return pltpu.CompilerParams(
        dimension_semantics=("parallel",),
        vmem_limit_bytes=_VMEM_LIMIT,
    )


# ---------------------------------------------------------------------------
# Kernel 1: MF prediction  pred[b] = sum_d u[b, d] * s[b, d]
#
# Inputs are presented D-major ([D, Bp]) so the reduction runs over the
# sublane axis and the output block is a lane-dense (1, tile_b) row
# (tile_b % 128 == 0)  ->  full-width unmasked stores.
# ---------------------------------------------------------------------------
def _pred_kernel(u_ref, s_ref, o_ref):
    prod = u_ref[...].astype(jnp.float32) * s_ref[...].astype(jnp.float32)
    o_ref[...] = jnp.sum(prod, axis=0, keepdims=True)  # [1, tile_b]


@functools.partial(jax.jit, static_argnames=("tile_b",))
def mf_predict(user_embeds, serv_embeds, tile_b=None):
    B, D = user_embeds.shape
    if tile_b is None:
        tile_b = min(_round_up(B, 128), 2048)
    tile_b = _round_up(max(128, int(tile_b)), 128)  # lane-dense output blocks
    Bp = _round_up(B, tile_b)
    # Wrapper-side transpose: layout plumbing to get a lane-dense output slab.
    u_t = user_embeds.T  # [D, B]
    s_t = serv_embeds.T  # [D, B]
    if Bp != B:
        pad = ((0, 0), (0, Bp - B))
        u_t = jnp.pad(u_t, pad)
        s_t = jnp.pad(s_t, pad)
    grid = (Bp // tile_b,)
    # TODO(synk): for production batch sizes the embedding gather could also
    # be fused in via PrefetchScalarGridSpec + pl.Element row index_maps.
    out = pl.pallas_call(
        _pred_kernel,
        out_shape=jax.ShapeDtypeStruct((1, Bp), jnp.float32),
        grid=grid,
        in_specs=[
            pl.BlockSpec((D, tile_b), lambda i: (0, i)),
            pl.BlockSpec((D, tile_b), lambda i: (0, i)),
        ],
        out_specs=pl.BlockSpec((1, tile_b), lambda i: (0, i)),
        compiler_params=_compiler_params(),
    )(u_t, s_t)
    return out[0, :B]


# ---------------------------------------------------------------------------
# Kernel 2: agg() — mean over the G edge groups:  [G, N, D] -> [N, D]
# ---------------------------------------------------------------------------
def _mean_agg_kernel(stack_ref, o_ref, *, inv_g):
    stack = stack_ref[...].astype(jnp.float32)  # [G, TILE_N, D]
    o_ref[...] = jnp.sum(stack, axis=0) * inv_g


@functools.partial(jax.jit, static_argnames=("tile_n",))
def agg_user_embeds(stack, tile_n=None):
    G, N, D = stack.shape
    in_b = stack.dtype.itemsize
    if tile_n is None:
        # double-buffered input + output + in-kernel f32 upcast temporary
        bytes_per_row = 2 * G * D * in_b + 2 * D * 4 + 2 * G * D * 4
        tile_n = _pick_row_tile(N, bytes_per_row)
    tile_n = min(int(tile_n), N)
    if tile_n < N:
        tile_n = _round_down8(tile_n)
    grid = (pl.cdiv(N, tile_n),)
    kernel = functools.partial(_mean_agg_kernel, inv_g=1.0 / G)
    return pl.pallas_call(
        kernel,
        out_shape=jax.ShapeDtypeStruct((N, D), jnp.float32),
        grid=grid,
        in_specs=[pl.BlockSpec((G, tile_n, D), lambda i: (0, i, 0))],
        out_specs=pl.BlockSpec((tile_n, D), lambda i: (i, 0)),
        compiler_params=_compiler_params(),
    )(stack)


# ---------------------------------------------------------------------------
# Kernel 3: att() — per-item attention over the G groups.
#   scores[g, n] = sum_d stack[g, n, d] * att_vec[d]
#   w = softmax over g;   out[n, d] = sum_g w[g, n] * stack[g, n, d]
# ---------------------------------------------------------------------------
def _att_agg_kernel(stack_ref, attv_ref, o_ref):
    stack = stack_ref[...].astype(jnp.float32)  # [G, TILE_N, D]
    attv = attv_ref[...].astype(jnp.float32)    # [1, D]
    scores = jnp.sum(stack * attv[None, :, :], axis=-1, keepdims=True)  # [G,T,1]
    m = jnp.max(scores, axis=0, keepdims=True)
    e = jnp.exp(scores - m)
    # approx reciprocal -> EUP slot, otherwise idle in this mem-bound kernel
    w = e * pl.reciprocal(jnp.sum(e, axis=0, keepdims=True), approx=True)
    o_ref[...] = jnp.sum(w * stack, axis=0)     # [TILE_N, D]


@functools.partial(jax.jit, static_argnames=("tile_n",))
def att_item_embeds(stack, att_vec, tile_n=None):
    G, N, D = stack.shape
    in_b = stack.dtype.itemsize
    if tile_n is None:
        # double-buffered input + output + f32 temporaries (stack, e/w, prod)
        bytes_per_row = 2 * G * D * in_b + 2 * D * 4 + 4 * G * D * 4
        tile_n = _pick_row_tile(N, bytes_per_row)
    tile_n = min(int(tile_n), N)
    if tile_n < N:
        tile_n = _round_down8(tile_n)
    grid = (pl.cdiv(N, tile_n),)
    attv = att_vec.reshape(1, D)
    return pl.pallas_call(
        _att_agg_kernel,
        out_shape=jax.ShapeDtypeStruct((N, D), jnp.float32),
        grid=grid,
        in_specs=[
            pl.BlockSpec((G, tile_n, D), lambda i: (0, i, 0)),
            pl.BlockSpec((1, D), lambda i: (0, 0)),
        ],
        out_specs=pl.BlockSpec((tile_n, D), lambda i: (i, 0)),
        compiler_params=_compiler_params(),
    )(stack, attv)


# ---------------------------------------------------------------------------
# EdgeModel wrapper (synthetic, deterministic parameters)
# ---------------------------------------------------------------------------
class EdgeModelJAX:
    def __init__(self, user_num, serv_num, dim, n_groups=5, seed=0):
        self.user_num = user_num
        self.serv_num = serv_num
        self.dim = dim
        self.n_groups = n_groups
        key = jax.random.PRNGKey(seed)
        k_u, k_s, k_a = jax.random.split(key, 3)
        # Per-group embedding tables produced by the 5 edge_train rounds.
        # Stored bf16 in HBM (halves streaming bytes); kernels upcast to f32.
        self.user_embed_groups = (0.1 * jax.random.normal(
            k_u, (n_groups, user_num, dim), dtype=jnp.float32)).astype(jnp.bfloat16)
        self.item_embed_groups = (0.1 * jax.random.normal(
            k_s, (n_groups, serv_num, dim), dtype=jnp.float32)).astype(jnp.bfloat16)
        self.att_vec = jax.random.normal(
            k_a, (dim,), dtype=jnp.float32).astype(jnp.bfloat16)

    def forward(self, inputs, train=True):
        # inputs = (user_ids, serv_ids); gather is glue, reductions are Pallas.
        user_ids, serv_ids = inputs
        user_table, item_table = self.edge()
        u = user_table[user_ids]          # [B, D] f32
        s = item_table[serv_ids]          # [B, D] f32
        pred = mf_predict(u, s)           # [B]
        return pred, u, s

    def edge(self):
        # TODO(synk): the original edge() builds DataModules / runs
        # edge_train() per group with an optimizer; that training loop has no
        # Pallas equivalent and is replaced by the synthetic per-group tables.
        new_user_embed = agg_user_embeds(self.user_embed_groups)
        new_item_embed = att_item_embeds(self.item_embed_groups, self.att_vec)
        return new_user_embed, new_item_embed


# ---------------------------------------------------------------------------
# Pure-JAX reference for correctness
# ---------------------------------------------------------------------------
def _reference(model, user_ids, serv_ids):
    ug = model.user_embed_groups.astype(jnp.float32)
    ig = model.item_embed_groups.astype(jnp.float32)
    av = model.att_vec.astype(jnp.float32)
    u_tab = jnp.mean(ug, axis=0)
    scores = jnp.sum(ig * av[None, None, :], axis=-1, keepdims=True)
    w = jax.nn.softmax(scores, axis=0)
    i_tab = jnp.sum(w * ig, axis=0)
    u = u_tab[user_ids]
    s = i_tab[serv_ids]
    return jnp.sum(u * s, axis=-1), u, s, u_tab, i_tab


if __name__ == "__main__":
    user_num, serv_num, dim, batch = 256, 192, 128, 64

    model = EdgeModelJAX(user_num, serv_num, dim, n_groups=5, seed=0)

    key = jax.random.PRNGKey(0)
    k1, k2, k3, k4 = jax.random.split(key, 4)
    user_ids = jax.random.randint(k1, (batch,), 0, user_num)
    serv_ids = jax.random.randint(k2, (batch,), 0, serv_num)

    # End-to-end forward with auto-sized tiles.
    pred, u_emb, s_emb = model.forward((user_ids, serv_ids), train=True)
    jax.block_until_ready(pred)
    jax.block_until_ready(u_emb)
    jax.block_until_ready(s_emb)

    ref_pred, ref_u, ref_s, ref_utab, ref_itab = _reference(model, user_ids, serv_ids)
    assert jnp.allclose(pred, ref_pred, atol=2e-3, rtol=2e-3), "pred mismatch"
    assert jnp.allclose(u_emb, ref_u, atol=2e-3, rtol=2e-3), "user embed mismatch"
    assert jnp.allclose(s_emb, ref_s, atol=2e-3, rtol=2e-3), "serv embed mismatch"

    # Exercise the multi-tile pipelined grid paths explicitly (small tiles).
    u_tab_t = agg_user_embeds(model.user_embed_groups, tile_n=64)      # grid=(4,)
    i_tab_t = att_item_embeds(model.item_embed_groups, model.att_vec,
                              tile_n=64)                               # grid=(3,)
    jax.block_until_ready(u_tab_t)
    jax.block_until_ready(i_tab_t)
    assert jnp.allclose(u_tab_t, ref_utab, atol=2e-3, rtol=2e-3), "tiled agg mismatch"
    assert jnp.allclose(i_tab_t, ref_itab, atol=2e-3, rtol=2e-3), "tiled att mismatch"

    # Multi-tile + padding path for the lane-dense prediction kernel:
    # batch=300 pads to 384 with tile_b=128  ->  grid=(3,).
    big_uids = jax.random.randint(k3, (300,), 0, user_num)
    big_sids = jax.random.randint(k4, (300,), 0, serv_num)
    u_big = ref_utab[big_uids]
    s_big = ref_itab[big_sids]
    pred_big = mf_predict(u_big, s_big, tile_b=128)
    jax.block_until_ready(pred_big)
    ref_big = jnp.sum(u_big * s_big, axis=-1)
    assert jnp.allclose(pred_big, ref_big, atol=2e-3, rtol=2e-3), "tiled pred mismatch"

    print("KERNEL_OK")
</pallas_src>

<mosaic_0001>
module attributes {stable_mosaic.version = 11 : i64} {
  func.func @_mean_agg_kernel(%arg0: i32, %arg1: memref<5x256x128xbf16, #tpu.memory_space<vmem>>, %arg2: memref<256x128xf32, #tpu.memory_space<vmem>>) attributes {dimension_semantics = [#tpu.dimension_semantics<parallel>], iteration_bounds = array<i64: 1>, scalar_prefetch = 0 : i64, scratch_operands = 0 : i64, tpu.core_type = #tpu.core_type<tc>, window_params = [{transform_indices = @transform_0, window_bounds = array<i64: 5, 256, 128>}, {transform_indices = @transform_1, window_bounds = array<i64: 256, 128>}]} {
    %c0 = arith.constant 0 : index
    %c0_0 = arith.constant 0 : index
    %c0_1 = arith.constant 0 : index
    %0 = vector.load %arg1[%c0, %c0_0, %c0_1] : memref<5x256x128xbf16, #tpu.memory_space<vmem>>, vector<5x256x128xbf16>
    %1 = arith.extf %0 : vector<5x256x128xbf16> to vector<5x256x128xf32>
    %cst = arith.constant dense<0.000000e+00> : vector<256x128xf32>
    %2 = vector.multi_reduction <add>, %1, %cst [0] : vector<5x256x128xf32> to vector<256x128xf32>
    %cst_2 = arith.constant 2.000000e-01 : f32
    %3 = vector.broadcast %cst_2 : f32 to vector<256x128xf32>
    %4 = arith.mulf %2, %3 : vector<256x128xf32>
    %c0_3 = arith.constant 0 : index
    %c0_4 = arith.constant 0 : index
    %5 = vector.load %arg2[%c0_3, %c0_4] : memref<256x128xf32, #tpu.memory_space<vmem>>, vector<256x128xf32>
    tpu.vector_store %arg2[%c0_3, %c0_4], %4 {strides = array<i32>} : memref<256x128xf32, #tpu.memory_space<vmem>>, vector<256x128xf32>,
    return
  }
  func.func @transform_0(%arg0: i32) -> (i32, i32, i32) {
    %c0_i32 = arith.constant 0 : i32
    %c0_i32_0 = arith.constant 0 : i32
    %c0_i32_1 = arith.constant 0 : i32
    return %c0_i32, %arg0, %c0_i32_0 : i32, i32, i32
  }
  func.func @transform_1(%arg0: i32) -> (i32, i32) {
    %c0_i32 = arith.constant 0 : i32
    %c0_i32_0 = arith.constant 0 : i32
    return %arg0, %c0_i32 : i32, i32
  }
}

</mosaic_0001>

<llo_original>
// kernel: agg_user_embeds.1
$region0: #{agg_user_embeds.1}
  #allocation0 [shape = 'u32[]', space=smem, size = 0x4, offset = 0x4, fixed_abs, tag = 'smem constant byte address 0x4 - core index']
  #allocation1 [shape = 'u32[144,128]{1,0:T(1,128)}', space=vmem, size = 0x12000, scoped, tag = 'internal scratch']
  %s0 = inlined_call_operand.hbm [shape: bf16[5,256,128], index: 0, kind: input, shape index: {}]
  %s1 = inlined_call_operand.hbm [shape: f32[256,128], index: 1, kind: output, shape index: {}]
  %s2 = sld [smem:[#allocation0]]
  $region18: #{agg_user_embeds.1} parent=0
    _
  %s4 = ssub.s32 1, %s2
  %s5 = scalar_select 0, %s4, %s2
  $region1: #{agg_user_embeds.1} parent=0
    #allocation2 [shape = 'u8[327680]{0}', space=vmem, size = 0x50000, scoped, tag = 'input window, operand 0, single buffered']
    #allocation3 [shape = 's32[1]{0}', space=sflag, size = 0x4, scoped, tag = 'scoped memory for agg_user_embeds.1']
    #allocation4 [shape = 's32[1]{0}', space=sflag, size = 0x4, scoped, tag = 'scoped memory for agg_user_embeds.1']
    #allocation5 [shape = 'u8[131072]{0}', space=vmem, size = 0x20000, scoped, tag = 'output window, operand 0, single buffered']
    %6 = vsyncpa [#allocation3], 0
    %7 = vsyncpa [#allocation4], 0
    // Predicated region
    $region2: #{agg_user_embeds.1} parent=1 // pred_check
      _
    $region3: #{agg_user_embeds.1} parent=1 // pred_check_branch
      %9 = sbr.rel (0) target = $region5
    $region4: #{agg_user_embeds.1} parent=1 // pred_region
      %s11 = ssub.s32 10240, 10240
      %12 = vsyncadd [#allocation3], %s11
      %s13 = sshll.u32 [#allocation2], 4
      %s14 = int_to_ptr.vmem [resolvable:$true] %s13
      %19 = dma.hbm_to_vmem [thread:$0]  %s0, 10240, %s14, [#allocation3], 64, 64, 4
    $region5: #{agg_user_embeds.1} parent=1 // pred_fallthru
      _
    // Predicated region
    $region6: #{agg_user_embeds.1} parent=1 // pred_check
      _
    $region7: #{agg_user_embeds.1} parent=1 // pred_check_branch
      %21 = sbr.rel (0) target = $region9
    $region8: #{agg_user_embeds.1} parent=1 // pred_region
      %22 = dma.done [#allocation3], 10240
    $region9: #{agg_user_embeds.1} parent=1 // pred_fallthru
      _
    %v23 = vld [vmem:[#allocation2] sm:$0xf]
    %v24 = vld [vmem:[#allocation2 + $0x4] sm:$0xf]
    %v25 = vld [vmem:[#allocation2 + $0x8] sm:$0xf]
    %v26 = vld [vmem:[#allocation2 + $0xc] sm:$0xf]
    %v27 = vld [vmem:[#allocation2 + $0x10] sm:$0xf]
    %v28 = vld [vmem:[#allocation2 + $0x14] sm:$0xf]
    %v29 = vld [vmem:[#allocation2 + $0x18] sm:$0xf]
    %v30 = vld [vmem:[#allocation2 + $0x1c] sm:$0xf]
    %v31 = vld [vmem:[#allocation2 + $0x20] sm:$0xf]
    %v32 = vld [vmem:[#allocation2 + $0x24] sm:$0xf]
    %v33 = vld [vmem:[#allocation2 + $0x28] sm:$0xf]
    %v34 = vld [vmem:[#allocation2 + $0x2c] sm:$0xf]
    %v35 = vld [vmem:[#allocation2 + $0x30] sm:$0xf]
    %v36 = vld [vmem:[#allocation2 + $0x34] sm:$0xf]
    %v37 = vld [vmem:[#allocation2 + $0x38] sm:$0xf]
    %v38 = vld [vmem:[#allocation2 + $0x3c] sm:$0xf]
    %v39 = vld [vmem:[#allocation2 + $0x40] sm:$0xf]
    %v40 = vld [vmem:[#allocation2 + $0x44] sm:$0xf]
    %v41 = vld [vmem:[#allocation2 + $0x48] sm:$0xf]
    %v42 = vld [vmem:[#allocation2 + $0x4c] sm:$0xf]
    %v43 = vld [vmem:[#allocation2 + $0x50] sm:$0xf]
    %v44 = vld [vmem:[#allocation2 + $0x54] sm:$0xf]
    %v45 = vld [vmem:[#allocation2 + $0x58] sm:$0xf]
    %v46 = vld [vmem:[#allocation2 + $0x5c] sm:$0xf]
    %v47 = vld [vmem:[#allocation2 + $0x60] sm:$0xf]
    %v48 = vld [vmem:[#allocation2 + $0x64] sm:$0xf]
    %v49 = vld [vmem:[#allocation2 + $0x68] sm:$0xf]
    %v50 = vld [vmem:[#allocation2 + $0x6c] sm:$0xf]
    %v51 = vld [vmem:[#allocation2 + $0x70] sm:$0xf]
    %v52 = vld [vmem:[#allocation2 + $0x74] sm:$0xf]
    %v53 = vld [vmem:[#allocation2 + $0x78] sm:$0xf]
    %v54 = vld [vmem:[#allocation2 + $0x7c] sm:$0xf]
    %v55 = vld [vmem:[#allocation2 + $0x80] sm:$0xf]
    %v56 = vld [vmem:[#allocation2 + $0x84] sm:$0xf]
    %v57 = vld [vmem:[#allocation2 + $0x88] sm:$0xf]
    %v58 = vld [vmem:[#allocation2 + $0x8c] sm:$0xf]
    %v59 = vld [vmem:[#allocation2 + $0x90] sm:$0xf]
    %v60 = vld [vmem:[#allocation2 + $0x94] sm:$0xf]
    %v61 = vld [vmem:[#allocation2 + $0x98] sm:$0xf]
    %v62 = vld [vmem:[#allocation2 + $0x9c] sm:$0xf]
    %v63 = vld [vmem:[#allocation2 + $0xa0] sm:$0xf]
    %v64 = vld [vmem:[#allocation2 + $0xa4] sm:$0xf]
    %v65 = vld [vmem:[#allocation2 + $0xa8] sm:$0xf]
    %v66 = vld [vmem:[#allocation2 + $0xac] sm:$0xf]
    %v67 = vld [vmem:[#allocation2 + $0xb0] sm:$0xf]
    %v68 = vld [vmem:[#allocation2 + $0xb4] sm:$0xf]
    %v69 = vld [vmem:[#allocation2 + $0xb8] sm:$0xf]
    %v70 = vld [vmem:[#allocation2 + $0xbc] sm:$0xf]
    %v71 = vld [vmem:[#allocation2 + $0xc0] sm:$0xf]
    %v72 = vld [vmem:[#allocation2 + $0xc4] sm:$0xf]
    %v73 = vld [vmem:[#allocation2 + $0xc8] sm:$0xf]
    %v74 = vld [vmem:[#allocation2 + $0xcc] sm:$0xf]
    %v75 = vld [vmem:[#allocation2 + $0xd0] sm:$0xf]
    %v76 = vld [vmem:[#allocation2 + $0xd4] sm:$0xf]
    %v77 = vld [vmem:[#allocation2 + $0xd8] sm:$0xf]
    %v78 = vld [vmem:[#allocation2 + $0xdc] sm:$0xf]
    %v79 = vld [vmem:[#allocation2 + $0xe0] sm:$0xf]
    %v80 = vld [vmem:[#allocation2 + $0xe4] sm:$0xf]
    %v81 = vld [vmem:[#allocation2 + $0xe8] sm:$0xf]
    %v82 = vld [vmem:[#allocation2 + $0xec] sm:$0xf]
    %v83 = vld [vmem:[#allocation2 + $0xf0] sm:$0xf]
    %v84 = vld [vmem:[#allocation2 + $0xf4] sm:$0xf]
    %v85 = vld [vmem:[#allocation2 + $0xf8] sm:$0xf]
    %v86 = vld [vmem:[#allocation2 + $0xfc] sm:$0xf]
    %v87 = vld [vmem:[#allocation2 + $0x100] sm:$0xf]
    %v88 = vld [vmem:[#allocation2 + $0x104] sm:$0xf]
    %v89 = vld [vmem:[#allocation2 + $0x108] sm:$0xf]
    %v90 = vld [vmem:[#allocation2 + $0x10c] sm:$0xf]
    %v91 = vld [vmem:[#allocation2 + $0x110] sm:$0xf]
    %v92 = vld [vmem:[#allocation2 + $0x114] sm:$0xf]
    %v93 = vld [vmem:[#allocation2 + $0x118] sm:$0xf]
    %v94 = vld [vmem:[#allocation2 + $0x11c] sm:$0xf]
    %v95 = vld [vmem:[#allocation2 + $0x120] sm:$0xf]
    %v96 = vld [vmem:[#allocation2 + $0x124] sm:$0xf]
    %v97 = vld [vmem:[#allocation2 + $0x128] sm:$0xf]
    %v98 = vld [vmem:[#allocation2 + $0x12c] sm:$0xf]
    %v99 = vld [vmem:[#allocation2 + $0x130] sm:$0xf]
    %v100 = vld [vmem:[#allocation2 + $0x134] sm:$0xf]
    %v101 = vld [vmem:[#allocation2 + $0x138] sm:$0xf]
    %v102 = vld [vmem:[#allocation2 + $0x13c] sm:$0xf]
    %v103 = vld [vmem:[#allocation2 + $0x140] sm:$0xf]
    %v104 = vld [vmem:[#allocation2 + $0x144] sm:$0xf]
    %v105 = vld [vmem:[#allocation2 + $0x148] sm:$0xf]
    %v106 = vld [vmem:[#allocation2 + $0x14c] sm:$0xf]
    %v107 = vld [vmem:[#allocation2 + $0x150] sm:$0xf]
    %v108 = vld [vmem:[#allocation2 + $0x154] sm:$0xf]
    %v109 = vld [vmem:[#allocation2 + $0x158] sm:$0xf]
    %v110 = vld [vmem:[#allocation2 + $0x15c] sm:$0xf]
    %v111 = vld [vmem:[#allocation2 + $0x160] sm:$0xf]
    %v112 = vld [vmem:[#allocation2 + $0x164] sm:$0xf]
    %v113 = vld [vmem:[#allocation2 + $0x168] sm:$0xf]
    %v114 = vld [vmem:[#allocation2 + $0x16c] sm:$0xf]
    %v115 = vld [vmem:[#allocation2 + $0x170] sm:$0xf]
    %v116 = vld [vmem:[#allocation2 + $0x174] sm:$0xf]
    %v117 = vld [vmem:[#allocation2 + $0x178] sm:$0xf]
    %v118 = vld [vmem:[#allocation2 + $0x17c] sm:$0xf]
    %v119 = vld [vmem:[#allocation2 + $0x180] sm:$0xf]
    %v120 = vld [vmem:[#allocation2 + $0x184] sm:$0xf]
    %v121 = vld [vmem:[#allocation2 + $0x188] sm:$0xf]
    %v122 = vld [vmem:[#allocation2 + $0x18c] sm:$0xf]
    %v123 = vld [vmem:[#allocation2 + $0x190] sm:$0xf]
    %v124 = vld [vmem:[#allocation2 + $0x194] sm:$0xf]
    %v125 = vld [vmem:[#allocation2 + $0x198] sm:$0xf]
    %v126 = vld [vmem:[#allocation2 + $0x19c] sm:$0xf]
    %v127 = vld [vmem:[#allocation2 + $0x1a0] sm:$0xf]
    %v128 = vld [vmem:[#allocation2 + $0x1a4] sm:$0xf]
    %v129 = vld [vmem:[#allocation2 + $0x1a8] sm:$0xf]
    %v130 = vld [vmem:[#allocation2 + $0x1ac] sm:$0xf]
    %v131 = vld [vmem:[#allocation2 + $0x1b0] sm:$0xf]
    %v132 = vld [vmem:[#allocation2 + $0x1b4] sm:$0xf]
    %v133 = vld [vmem:[#allocation2 + $0x1b8] sm:$0xf]
    %v134 = vld [vmem:[#allocation2 + $0x1bc] sm:$0xf]
    %v135 = vld [vmem:[#allocation2 + $0x1c0] sm:$0xf]
    %v136 = vld [vmem:[#allocation2 + $0x1c4] sm:$0xf]
    %v137 = vld [vmem:[#allocation2 + $0x1c8] sm:$0xf]
    %v138 = vld [vmem:[#allocation2 + $0x1cc] sm:$0xf]
    %v139 = vld [vmem:[#allocation2 + $0x1d0] sm:$0xf]
    %v140 = vld [vmem:[#allocation2 + $0x1d4] sm:$0xf]
    %v141 = vld [vmem:[#allocation2 + $0x1d8] sm:$0xf]
    %v142 = vld [vmem:[#allocation2 + $0x1dc] sm:$0xf]
    %v143 = vld [vmem:[#allocation2 + $0x1e0] sm:$0xf]
    %v144 = vld [vmem:[#allocation2 + $0x1e4] sm:$0xf]
    %v145 = vld [vmem:[#allocation2 + $0x1e8] sm:$0xf]
    %v146 = vld [vmem:[#allocation2 + $0x1ec] sm:$0xf]
    %v147 = vld [vmem:[#allocation2 + $0x1f0] sm:$0xf]
    %v148 = vld [vmem:[#allocation2 + $0x1f4] sm:$0xf]
    %v149 = vld [vmem:[#allocation2 + $0x1f8] sm:$0xf]
    %v150 = vld [vmem:[#allocation2 + $0x1fc] sm:$0xf]
    %v151 = vld [vmem:[#allocation2 + $0x200] sm:$0xf]
    %v152 = vld [vmem:[#allocation2 + $0x204] sm:$0xf]
    %v153 = vld [vmem:[#allocation2 + $0x208] sm:$0xf]
    %v154 = vld [vmem:[#allocation2 + $0x20c] sm:$0xf]
    %v155 = vld [vmem:[#allocation2 + $0x210] sm:$0xf]
    %v156 = vld [vmem:[#allocation2 + $0x214] sm:$0xf]
    %v157 = vld [vmem:[#allocation2 + $0x218] sm:$0xf]
    %v158 = vld [vmem:[#allocation2 + $0x21c] sm:$0xf]
    %v159 = vld [vmem:[#allocation2 + $0x220] sm:$0xf]
    %v160 = vld [vmem:[#allocation2 + $0x224] sm:$0xf]
    %v161 = vld [vmem:[#allocation2 + $0x228] sm:$0xf]
    %v162 = vld [vmem:[#allocation2 + $0x22c] sm:$0xf]
    %v163 = vld [vmem:[#allocation2 + $0x230] sm:$0xf]
    %v164 = vld [vmem:[#allocation2 + $0x234] sm:$0xf]
    %v165 = vld [vmem:[#allocation2 + $0x238] sm:$0xf]
    %v166 = vld [vmem:[#allocation2 + $0x23c] sm:$0xf]
    %v167 = vld [vmem:[#allocation2 + $0x240] sm:$0xf]
    %v168 = vld [vmem:[#allocation2 + $0x244] sm:$0xf]
    %v169 = vld [vmem:[#allocation2 + $0x248] sm:$0xf]
    %v170 = vld [vmem:[#allocation2 + $0x24c] sm:$0xf]
    %v171 = vld [vmem:[#allocation2 + $0x250] sm:$0xf]
    %v172 = vld [vmem:[#allocation2 + $0x254] sm:$0xf]
    %v173 = vld [vmem:[#allocation2 + $0x258] sm:$0xf]
    %v174 = vld [vmem:[#allocation2 + $0x25c] sm:$0xf]
    %v175 = vld [vmem:[#allocation2 + $0x260] sm:$0xf]
    %v176 = vld [vmem:[#allocation2 + $0x264] sm:$0xf]
    %v177 = vld [vmem:[#allocation2 + $0x268] sm:$0xf]
    %v178 = vld [vmem:[#allocation2 + $0x26c] sm:$0xf]
    %v179 = vld [vmem:[#allocation2 + $0x270] sm:$0xf]
    %v180 = vld [vmem:[#allocation2 + $0x274] sm:$0xf]
    %v181 = vld [vmem:[#allocation2 + $0x278] sm:$0xf]
    %v182 = vld [vmem:[#allocation2 + $0x27c] sm:$0xf]
    %v183 = vunpack.c.l.bf16 %v23
    %v184 = vunpack.c.l.bf16 %v24
    %v185 = vunpack.c.l.bf16 %v25
    %v186 = vunpack.c.l.bf16 %v26
    %v187 = vunpack.c.l.bf16 %v27
    %v188 = vunpack.c.l.bf16 %v28
    %v189 = vunpack.c.l.bf16 %v29
    %v190 = vunpack.c.l.bf16 %v30
    %v191 = vunpack.c.l.bf16 %v31
    %v192 = vunpack.c.l.bf16 %v32
    %v193 = vunpack.c.l.bf16 %v33
    %v194 = vunpack.c.l.bf16 %v34
    %v195 = vunpack.c.l.bf16 %v35
    %v196 = vunpack.c.l.bf16 %v36
    %v197 = vunpack.c.l.bf16 %v37
    %v198 = vunpack.c.l.bf16 %v38
    %v199 = vunpack.c.l.bf16 %v39
    %v200 = vunpack.c.l.bf16 %v40
    %v201 = vunpack.c.l.bf16 %v41
    %v202 = vunpack.c.l.bf16 %v42
    %v203 = vunpack.c.l.bf16 %v43
    %v204 = vunpack.c.l.bf16 %v44
    %v205 = vunpack.c.l.bf16 %v45
    %v206 = vunpack.c.l.bf16 %v46
    %v207 = vunpack.c.l.bf16 %v47
    %v208 = vunpack.c.l.bf16 %v48
    %v209 = vunpack.c.l.bf16 %v49
    %v210 = vunpack.c.l.bf16 %v50
    %v211 = vunpack.c.l.bf16 %v51
    %v212 = vunpack.c.l.bf16 %v52
    %v213 = vunpack.c.l.bf16 %v53
    %v214 = vunpack.c.l.bf16 %v54
    %v215 = vunpack.c.l.bf16 %v55
    %v216 = vunpack.c.l.bf16 %v56
    %v217 = vunpack.c.l.bf16 %v57
    %v218 = vunpack.c.l.bf16 %v58
    %v219 = vunpack.c.l.bf16 %v59
    %v220 = vunpack.c.l.bf16 %v60
    %v221 = vunpack.c.l.bf16 %v61
    %v222 = vunpack.c.l.bf16 %v62
    %v223 = vunpack.c.l.bf16 %v63
    %v224 = vunpack.c.l.bf16 %v64
    %v225 = vunpack.c.l.bf16 %v65
    %v226 = vunpack.c.l.bf16 %v66
    %v227 = vunpack.c.l.bf16 %v67
    %v228 = vunpack.c.l.bf16 %v68
    %v229 = vunpack.c.l.bf16 %v69
    %v230 = vunpack.c.l.bf16 %v70
    %v231 = vunpack.c.l.bf16 %v71
    %v232 = vunpack.c.l.bf16 %v72
    %v233 = vunpack.c.l.bf16 %v73
    %v234 = vunpack.c.l.bf16 %v74
    %v235 = vunpack.c.l.bf16 %v75
    %v236 = vunpack.c.l.bf16 %v76
    %v237 = vunpack.c.l.bf16 %v77
    %v238 = vunpack.c.l.bf16 %v78
    %v239 = vunpack.c.l.bf16 %v79
    %v240 = vunpack.c.l.bf16 %v80
    %v241 = vunpack.c.l.bf16 %v81
    %v242 = vunpack.c.l.bf16 %v82
    %v243 = vunpack.c.l.bf16 %v83
    %v244 = vunpack.c.l.bf16 %v84
    %v245 = vunpack.c.l.bf16 %v85
    %v246 = vunpack.c.l.bf16 %v86
    %v247 = vunpack.c.l.bf16 %v87
    %v248 = vunpack.c.l.bf16 %v88
    %v249 = vunpack.c.l.bf16 %v89
    %v250 = vunpack.c.l.bf16 %v90
    %v251 = vunpack.c.l.bf16 %v91
    %v252 = vunpack.c.l.bf16 %v92
    %v253 = vunpack.c.l.bf16 %v93
    %v254 = vunpack.c.l.bf16 %v94
    %v255 = vunpack.c.l.bf16 %v95
    %v256 = vunpack.c.l.bf16 %v96
    %v257 = vunpack.c.l.bf16 %v97
    %v258 = vunpack.c.l.bf16 %v98
    %v259 = vunpack.c.l.bf16 %v99
    %v260 = vunpack.c.l.bf16 %v100
    %v261 = vunpack.c.l.bf16 %v101
    %v262 = vunpack.c.l.bf16 %v102
    %v263 = vunpack.c.l.bf16 %v103
    %v264 = vunpack.c.l.bf16 %v104
    %v265 = vunpack.c.l.bf16 %v105
    %v266 = vunpack.c.l.bf16 %v106
    %v267 = vunpack.c.l.bf16 %v107
    %v268 = vunpack.c.l.bf16 %v108
    %v269 = vunpack.c.l.bf16 %v109
    %v270 = vunpack.c.l.bf16 %v110
    %v271 = vunpack.c.l.bf16 %v111
    %v272 = vunpack.c.l.bf16 %v112
    %v273 = vunpack.c.l.bf16 %v113
    %v274 = vunpack.c.l.bf16 %v114
    %v275 = vunpack.c.l.bf16 %v115
    %v276 = vunpack.c.l.bf16 %v116
    %v277 = vunpack.c.l.bf16 %v117
    %v278 = vunpack.c.l.bf16 %v118
    %v279 = vunpack.c.l.bf16 %v119
    %v280 = vunpack.c.l.bf16 %v120
    %v281 = vunpack.c.l.bf16 %v121
    %v282 = vunpack.c.l.bf16 %v122
    %v283 = vunpack.c.l.bf16 %v123
    %v284 = vunpack.c.l.bf16 %v124
    %v285 = vunpack.c.l.bf16 %v125
    %v286 = vunpack.c.l.bf16 %v126
    %v287 = vunpack.c.l.bf16 %v127
    %v288 = vunpack.c.l.bf16 %v128
    %v289 = vunpack.c.l.bf16 %v129
    %v290 = vunpack.c.l.bf16 %v130
    %v291 = vunpack.c.l.bf16 %v131
    %v292 = vunpack.c.l.bf16 %v132
    %v293 = vunpack.c.l.bf16 %v133
    %v294 = vunpack.c.l.bf16 %v134
    %v295 = vunpack.c.l.bf16 %v135
    %v296 = vunpack.c.l.bf16 %v136
    %v297 = vunpack.c.l.bf16 %v137
    %v298 = vunpack.c.l.bf16 %v138
    %v299 = vunpack.c.l.bf16 %v139
    %v300 = vunpack.c.l.bf16 %v140
    %v301 = vunpack.c.l.bf16 %v141
    %v302 = vunpack.c.l.bf16 %v142
    %v303 = vunpack.c.l.bf16 %v143
    %v304 = vunpack.c.l.bf16 %v144
    %v305 = vunpack.c.l.bf16 %v145
    %v306 = vunpack.c.l.bf16 %v146
    %v307 = vunpack.c.l.bf16 %v147
    %v308 = vunpack.c.l.bf16 %v148
    %v309 = vunpack.c.l.bf16 %v149
    %v310 = vunpack.c.l.bf16 %v150
    %v311 = vunpack.c.l.bf16 %v151
    %v312 = vunpack.c.l.bf16 %v152
    %v313 = vunpack.c.l.bf16 %v153
    %v314 = vunpack.c.l.bf16 %v154
    %v315 = vunpack.c.l.bf16 %v155
    %v316 = vunpack.c.l.bf16 %v156
    %v317 = vunpack.c.l.bf16 %v157
    %v318 = vunpack.c.l.bf16 %v158
    %v319 = vunpack.c.l.bf16 %v159
    %v320 = vunpack.c.l.bf16 %v160
    %v321 = vunpack.c.l.bf16 %v161
    %v322 = vunpack.c.l.bf16 %v162
    %v323 = vunpack.c.l.bf16 %v163
    %v324 = vunpack.c.l.bf16 %v164
    %v325 = vunpack.c.l.bf16 %v165
    %v326 = vunpack.c.l.bf16 %v166
    %v327 = vunpack.c.l.bf16 %v167
    %v328 = vunpack.c.l.bf16 %v168
    %v329 = vunpack.c.l.bf16 %v169
    %v330 = vunpack.c.l.bf16 %v170
    %v331 = vunpack.c.l.bf16 %v171
    %v332 = vunpack.c.l.bf16 %v172
    %v333 = vunpack.c.l.bf16 %v173
    %v334 = vunpack.c.l.bf16 %v174
    %v335 = vunpack.c.l.bf16 %v175
    %v336 = vunpack.c.l.bf16 %v176
    %v337 = vunpack.c.l.bf16 %v177
    %v338 = vunpack.c.l.bf16 %v178
    %v339 = vunpack.c.l.bf16 %v179
    %v340 = vunpack.c.l.bf16 %v180
    %v341 = vunpack.c.l.bf16 %v181
    %v342 = vunpack.c.l.bf16 %v182
    %v343 = vadd.f32 %v183, %v215
    %v344 = vadd.f32 %v343, %v247
    %v345 = vadd.f32 %v344, %v279
    %v346 = vadd.f32 %v345, %v311
    %v347 = vadd.f32 %v184, %v216
    %v348 = vadd.f32 %v347, %v248
    %v349 = vadd.f32 %v348, %v280
    %v350 = vadd.f32 %v349, %v312
    %v351 = vadd.f32 %v185, %v217
    %v352 = vadd.f32 %v351, %v249
    %v353 = vadd.f32 %v352, %v281
    %v354 = vadd.f32 %v353, %v313
    %v355 = vadd.f32 %v186, %v218
    %v356 = vadd.f32 %v355, %v250
    %v357 = vadd.f32 %v356, %v282
    %v358 = vadd.f32 %v357, %v314
    %v359 = vadd.f32 %v187, %v219
    %v360 = vadd.f32 %v359, %v251
    %v361 = vadd.f32 %v360, %v283
    %v362 = vadd.f32 %v361, %v315
    %v363 = vadd.f32 %v188, %v220
    %v364 = vadd.f32 %v363, %v252
    %v365 = vadd.f32 %v364, %v284
    %v366 = vadd.f32 %v365, %v316
    %v367 = vadd.f32 %v189, %v221
    %v368 = vadd.f32 %v367, %v253
    %v369 = vadd.f32 %v368, %v285
    %v370 = vadd.f32 %v369, %v317
    %v371 = vadd.f32 %v190, %v222
    %v372 = vadd.f32 %v371, %v254
    %v373 = vadd.f32 %v372, %v286
    %v374 = vadd.f32 %v373, %v318
    %v375 = vadd.f32 %v191, %v223
    %v376 = vadd.f32 %v375, %v255
    %v377 = vadd.f32 %v376, %v287
    %v378 = vadd.f32 %v377, %v319
    %v379 = vadd.f32 %v192, %v224
    %v380 = vadd.f32 %v379, %v256
    %v381 = vadd.f32 %v380, %v288
    %v382 = vadd.f32 %v381, %v320
    %v383 = vadd.f32 %v193, %v225
    %v384 = vadd.f32 %v383, %v257
    %v385 = vadd.f32 %v384, %v289
    %v386 = vadd.f32 %v385, %v321
    %v387 = vadd.f32 %v194, %v226
    %v388 = vadd.f32 %v387, %v258
    %v389 = vadd.f32 %v388, %v290
    %v390 = vadd.f32 %v389, %v322
    %v391 = vadd.f32 %v195, %v227
    %v392 = vadd.f32 %v391, %v259
    %v393 = vadd.f32 %v392, %v291
    %v394 = vadd.f32 %v393, %v323
    %v395 = vadd.f32 %v196, %v228
    %v396 = vadd.f32 %v395, %v260
    %v397 = vadd.f32 %v396, %v292
    %v398 = vadd.f32 %v397, %v324
    %v399 = vadd.f32 %v197, %v229
    %v400 = vadd.f32 %v399, %v261
    %v401 = vadd.f32 %v400, %v293
    %v402 = vadd.f32 %v401, %v325
    %v403 = vadd.f32 %v198, %v230
    %v404 = vadd.f32 %v403, %v262
    %v405 = vadd.f32 %v404, %v294
    %v406 = vadd.f32 %v405, %v326
    %v407 = vadd.f32 %v199, %v231
    %v408 = vadd.f32 %v407, %v263
    %v409 = vadd.f32 %v408, %v295
    %v410 = vadd.f32 %v409, %v327
    %v411 = vadd.f32 %v200, %v232
    %v412 = vadd.f32 %v411, %v264
    %v413 = vadd.f32 %v412, %v296
    %v414 = vadd.f32 %v413, %v328
    %v415 = vadd.f32 %v201, %v233
    %v416 = vadd.f32 %v415, %v265
    %v417 = vadd.f32 %v416, %v297
    %v418 = vadd.f32 %v417, %v329
    %v419 = vadd.f32 %v202, %v234
    %v420 = vadd.f32 %v419, %v266
    %v421 = vadd.f32 %v420, %v298
    %v422 = vadd.f32 %v421, %v330
    %v423 = vadd.f32 %v203, %v235
    %v424 = vadd.f32 %v423, %v267
    %v425 = vadd.f32 %v424, %v299
    %v426 = vadd.f32 %v425, %v331
    %v427 = vadd.f32 %v204, %v236
    %v428 = vadd.f32 %v427, %v268
    %v429 = vadd.f32 %v428, %v300
    %v430 = vadd.f32 %v429, %v332
    %v431 = vadd.f32 %v205, %v237
    %v432 = vadd.f32 %v431, %v269
    %v433 = vadd.f32 %v432, %v301
    %v434 = vadd.f32 %v433, %v333
    %v435 = vadd.f32 %v206, %v238
    %v436 = vadd.f32 %v435, %v270
    %v437 = vadd.f32 %v436, %v302
    %v438 = vadd.f32 %v437, %v334
    %v439 = vadd.f32 %v207, %v239
    %v440 = vadd.f32 %v439, %v271
    %v441 = vadd.f32 %v440, %v303
    %v442 = vadd.f32 %v441, %v335
    %v443 = vadd.f32 %v208, %v240
    %v444 = vadd.f32 %v443, %v272
    %v445 = vadd.f32 %v444, %v304
    %v446 = vadd.f32 %v445, %v336
    %v447 = vadd.f32 %v209, %v241
    %v448 = vadd.f32 %v447, %v273
    %v449 = vadd.f32 %v448, %v305
    %v450 = vadd.f32 %v449, %v337
    %v451 = vadd.f32 %v210, %v242
    %v452 = vadd.f32 %v451, %v274
    %v453 = vadd.f32 %v452, %v306
    %v454 = vadd.f32 %v453, %v338
    %v455 = vadd.f32 %v211, %v243
    %v456 = vadd.f32 %v455, %v275
    %v457 = vadd.f32 %v456, %v307
    %v458 = vadd.f32 %v457, %v339
    %v459 = vadd.f32 %v212, %v244
    %v460 = vadd.f32 %v459, %v276
    %v461 = vadd.f32 %v460, %v308
    %v462 = vadd.f32 %v461, %v340
    %v463 = vadd.f32 %v213, %v245
    %v464 = vadd.f32 %v463, %v277
    %v465 = vadd.f32 %v464, %v309
    %v466 = vadd.f32 %v465, %v341
    %v467 = vadd.f32 %v214, %v246
    %v468 = vadd.f32 %v467, %v278
    %v469 = vadd.f32 %v468, %v310
    %v470 = vadd.f32 %v469, %v342
    %v471 = vmul.f32 %v346, 0.2
    %v472 = vmul.f32 %v350, 0.2
    %v473 = vmul.f32 %v354, 0.2
    %v474 = vmul.f32 %v358, 0.2
    %v475 = vmul.f32 %v362, 0.2
    %v476 = vmul.f32 %v366, 0.2
    %v477 = vmul.f32 %v370, 0.2
    %v478 = vmul.f32 %v374, 0.2
    %v479 = vmul.f32 %v378, 0.2
    %v480 = vmul.f32 %v382, 0.2
    %v481 = vmul.f32 %v386, 0.2
    %v482 = vmul.f32 %v390, 0.2
    %v483 = vmul.f32 %v394, 0.2
    %v484 = vmul.f32 %v398, 0.2
    %v485 = vmul.f32 %v402, 0.2
    %v486 = vmul.f32 %v406, 0.2
    %v487 = vmul.f32 %v410, 0.2
    %v488 = vmul.f32 %v414, 0.2
    %v489 = vmul.f32 %v418, 0.2
    %v490 = vmul.f32 %v422, 0.2
    %v491 = vmul.f32 %v426, 0.2
    %v492 = vmul.f32 %v430, 0.2
    %v493 = vmul.f32 %v434, 0.2
    %v494 = vmul.f32 %v438, 0.2
    %v495 = vmul.f32 %v442, 0.2
    %v496 = vmul.f32 %v446, 0.2
    %v497 = vmul.f32 %v450, 0.2
    %v498 = vmul.f32 %v454, 0.2
    %v499 = vmul.f32 %v458, 0.2
    %v500 = vmul.f32 %v462, 0.2
    %v501 = vmul.f32 %v466, 0.2
    %v502 = vmul.f32 %v470, 0.2
    %503 = vst [vmem:[#allocation5] sm:$0xff] %v471
    %504 = vst [vmem:[#allocation5 + $0x8] sm:$0xff] %v472
    %505 = vst [vmem:[#allocation5 + $0x10] sm:$0xff] %v473
    %506 = vst [vmem:[#allocation5 + $0x18] sm:$0xff] %v474
    %507 = vst [vmem:[#allocation5 + $0x20] sm:$0xff] %v475
    %508 = vst [vmem:[#allocation5 + $0x28] sm:$0xff] %v476
    %509 = vst [vmem:[#allocation5 + $0x30] sm:$0xff] %v477
    %510 = vst [vmem:[#allocation5 + $0x38] sm:$0xff] %v478
    %511 = vst [vmem:[#allocation5 + $0x40] sm:$0xff] %v479
    %512 = vst [vmem:[#allocation5 + $0x48] sm:$0xff] %v480
    %513 = vst [vmem:[#allocation5 + $0x50] sm:$0xff] %v481
    %514 = vst [vmem:[#allocation5 + $0x58] sm:$0xff] %v482
    %515 = vst [vmem:[#allocation5 + $0x60] sm:$0xff] %v483
    %516 = vst [vmem:[#allocation5 + $0x68] sm:$0xff] %v484
    %517 = vst [vmem:[#allocation5 + $0x70] sm:$0xff] %v485
    %518 = vst [vmem:[#allocation5 + $0x78] sm:$0xff] %v486
    %519 = vst [vmem:[#allocation5 + $0x80] sm:$0xff] %v487
    %520 = vst [vmem:[#allocation5 + $0x88] sm:$0xff] %v488
    %521 = vst [vmem:[#allocation5 + $0x90] sm:$0xff] %v489
    %522 = vst [vmem:[#allocation5 + $0x98] sm:$0xff] %v490
    %523 = vst [vmem:[#allocation5 + $0xa0] sm:$0xff] %v491
    %524 = vst [vmem:[#allocation5 + $0xa8] sm:$0xff] %v492
    %525 = vst [vmem:[#allocation5 + $0xb0] sm:$0xff] %v493
    %526 = vst [vmem:[#allocation5 + $0xb8] sm:$0xff] %v494
    %527 = vst [vmem:[#allocation5 + $0xc0] sm:$0xff] %v495
    %528 = vst [vmem:[#allocation5 + $0xc8] sm:$0xff] %v496
    %529 = vst [vmem:[#allocation5 + $0xd0] sm:$0xff] %v497
    %530 = vst [vmem:[#allocation5 + $0xd8] sm:$0xff] %v498
    %531 = vst [vmem:[#allocation5 + $0xe0] sm:$0xff] %v499
    %532 = vst [vmem:[#allocation5 + $0xe8] sm:$0xff] %v500
    %533 = vst [vmem:[#allocation5 + $0xf0] sm:$0xff] %v501
    %534 = vst [vmem:[#allocation5 + $0xf8] sm:$0xff] %v502
    // Predicated region
    $region10: #{agg_user_embeds.1} parent=1 // pred_check
      _
    $region11: #{agg_user_embeds.1} parent=1 // pred_check_branch
      %536 = sbr.rel (0) target = $region13
    $region12: #{agg_user_embeds.1} parent=1 // pred_region
      %s538 = ssub.s32 4096, 4096
      %539 = vsyncadd [#allocation4], %s538
      %s540 = sshll.u32 [#allocation5], 4
      %s541 = int_to_ptr.vmem [resolvable:$true] %s540
      %546 = dma.vmem_to_hbm [thread:$0]  %s541, 4096, %s1, [#allocation4], 128, 128, 8
    $region13: #{agg_user_embeds.1} parent=1 // pred_fallthru
      _
    // Predicated region
    $region14: #{agg_user_embeds.1} parent=1 // pred_check
      _
    $region15: #{agg_user_embeds.1} parent=1 // pred_check_branch
      %548 = sbr.rel (0) target = $region17
    $region16: #{agg_user_embeds.1} parent=1 // pred_region
      %549 = dma.done [#allocation4], 4096
    $region17: #{agg_user_embeds.1} parent=1 // pred_fallthru
      _
    %550 = vsyncpa [#allocation3], 1
    %551 = vsyncpa [#allocation4], 1

</llo_original>
